<compile_context>
chip_gen: v7x
topology: tpu7x:2x2x1
jax: 0.10.0
libtpu: 0.0.40
codegen_flags: <defaults>
</compile_context>

<pallas_src>
import math

import jax
import jax.numpy as jnp
from jax.experimental import pallas as pl
from jax.experimental.pallas import tpu as pltpu


def _softplus_f32(w):
    # Matches torch.nn.functional.softplus (beta=1, threshold=20):
    # softplus(w) = w for w > 20, else log1p(exp(w)).
    w = w.astype(jnp.float32)
    return jnp.where(w > 20.0, w, jnp.log1p(jnp.exp(jnp.minimum(w, 20.0))))


def _scale_kernel(x_ref, w_ref, o_ref):
    # x_ref: (tile_rows, tile_lane) block of the (folded) input.
    # w_ref: (1, tile_lane) pre-activated weight row, broadcast over rows.
    o_ref[...] = x_ref[...] * w_ref[...]


def _chip_defaults():
    """(target_block_bytes, vmem_limit_bytes, min_grid_steps) per chip."""
    kind = ""
    try:
        kind = jax.devices()[0].device_kind.lower()
    except Exception:
        pass
    if "v7" in kind:
        # Higher HBM BW -> bigger blocks to amortize the ~0.35us per-step
        # overhead; >=8 grid steps so the "parallel" axis shards across both
        # TensorCores.  4 resident block buffers (~40 MiB) stay < 64 MiB VMEM.
        return 10 << 20, 48 << 20, 8
    # v5e / v6e (single TensorCore): 4 MiB blocks already put the per-step
    # overhead at a few percent; explicit limit lifts v5e's 16 MiB default.
    return 4 << 20, 40 << 20, 1


def _round_down(x, m):
    return (x // m) * m


def _round_up(x, m):
    return -(-x // m) * m


def custom_linear_layer(x, weight, *, target_block_bytes=None,
                        vmem_limit_bytes=None):
    """y = x * softplus(weight); weight of shape (size,) broadcasts over leading axes."""
    orig_shape = x.shape
    size = orig_shape[-1]
    assert weight.shape == (size,)
    dtype = x.dtype
    itemsize = jnp.dtype(dtype).itemsize

    blk_default, vmem_default, min_grid_steps = _chip_defaults()
    if target_block_bytes is None:
        target_block_bytes = blk_default
    if vmem_limit_bytes is None:
        vmem_limit_bytes = vmem_default

    # softplus of the grid-invariant weight: computed exactly once, outside the
    # kernel.  (Exact for f32 inputs; for bf16/fp8 inputs the activation is
    # cast to the input dtype before the multiply.)
    sp = _softplus_f32(weight).astype(dtype)

    rows = int(math.prod(orig_shape[:-1]))
    x2d = x.reshape(rows, size)

    # ---- Free lane-fold ------------------------------------------------------
    # Pack `fold` consecutive rows into the lane axis, but ONLY when it is a
    # pure reshape (fold divides rows) and the folded lane extent is a multiple
    # of 128 (unmasked stores).  No padding copies are ever made.
    fold = 1
    for f in range(1, 17):
        if rows % f or (size * f) % 128:
            continue
        fold = f
        if size * f >= 1024:        # lane-dense enough; stop growing the fold
            break
    rows_f = rows // fold
    lane = size * fold
    xf = x2d.reshape(rows_f, lane)
    wf = jnp.tile(sp, fold).reshape(1, lane)

    # ---- Tile geometry -------------------------------------------------------
    row_unit = max(8, 32 // itemsize)        # native sublane tile height
    # 4 block-sized buffers resident (double-buffered in + out) + headroom.
    max_block_bytes = min(target_block_bytes, vmem_limit_bytes // 5)

    tile_lane = lane
    if row_unit * lane * itemsize > max_block_bytes:
        # Feature dim too wide for even a minimum-height full-lane block:
        # block the lane axis too so double-buffering survives on all chips.
        tile_lane = max(128, _round_down(max_block_bytes // (row_unit * itemsize), 128))

    budget_rows = max(row_unit,
                      _round_down(max_block_bytes // (tile_lane * itemsize), row_unit))
    tile_rows = rows_f if budget_rows >= rows_f else budget_rows

    # v7x: make sure the grid has several steps so both TensorCores stream HBM.
    if (min_grid_steps > 1 and rows_f > row_unit
            and pl.cdiv(rows_f, tile_rows) * pl.cdiv(lane, tile_lane) < min_grid_steps):
        split = max(row_unit, _round_up(pl.cdiv(rows_f, min_grid_steps), row_unit))
        tile_rows = min(tile_rows, split)

    grid = (pl.cdiv(rows_f, tile_rows), pl.cdiv(lane, tile_lane))

    out = pl.pallas_call(
        _scale_kernel,
        out_shape=jax.ShapeDtypeStruct((rows_f, lane), dtype),
        grid_spec=pltpu.PrefetchScalarGridSpec(
            num_scalar_prefetch=0,
            grid=grid,
            in_specs=[
                pl.BlockSpec((tile_rows, tile_lane), lambda i, j: (i, j)),
                pl.BlockSpec((1, tile_lane), lambda i, j: (0, j)),
            ],
            out_specs=pl.BlockSpec((tile_rows, tile_lane), lambda i, j: (i, j)),
            # NOTE: pipeline_mode=pl.Buffered(3) on the x/out specs is a further
            # 0-3% sweep option if a profile shows gaps between block DMAs.
        ),
        compiler_params=pltpu.CompilerParams(
            dimension_semantics=("parallel", "parallel"),
            vmem_limit_bytes=vmem_limit_bytes,
        ),
    )(xf, wf)

    return out.reshape(orig_shape)


if __name__ == "__main__":
    key = jax.random.PRNGKey(0)
    kx, kw, kx2, kw2, kx3, kw3 = jax.random.split(key, 6)

    def ref_fn(x, w):
        return x * jnp.logaddexp(w.astype(jnp.float32), 0.0).astype(x.dtype)  # softplus

    # Shapes implied by the module: x is [batch, seq, size], weight is [size].
    batch, seq, size = 2, 8, 128
    x = jax.random.normal(kx, (batch, seq, size), dtype=jnp.float32)
    w = jax.random.normal(kw, (size,), dtype=jnp.float32)  # ~ torch.randn(size)
    y = jax.block_until_ready(custom_linear_layer(x, w))
    assert jnp.allclose(y, ref_fn(x, w), atol=1e-5, rtol=1e-5), "mismatch vs reference"

    # Non-128-aligned feature dim: no padding copies, masked-store path.
    x2 = jax.random.normal(kx2, (3, 5, 96), dtype=jnp.float32)
    w2 = jax.random.normal(kw2, (96,), dtype=jnp.float32)
    y2 = jax.block_until_ready(custom_linear_layer(x2, w2))
    assert jnp.allclose(y2, ref_fn(x2, w2), atol=1e-5, rtol=1e-5), "mismatch (non-aligned)"

    # Small block size forces a multi-step grid with a partial last row block.
    x3 = jax.random.normal(kx3, (2, 100, 128), dtype=jnp.float32)
    w3 = jax.random.normal(kw3, (128,), dtype=jnp.float32)
    y3 = jax.block_until_ready(
        custom_linear_layer(x3, w3, target_block_bytes=64 * 1024))
    assert jnp.allclose(y3, ref_fn(x3, w3), atol=1e-5, rtol=1e-5), "mismatch (partial block)"

    print("KERNEL_OK")
</pallas_src>

<mosaic_0001>
module attributes {stable_mosaic.version = 11 : i64} {
  func.func @_scale_kernel(%arg0: i32, %arg1: i32, %arg2: memref<2x1024xf32, #tpu.memory_space<vmem>>, %arg3: memref<1x1024xf32, #tpu.memory_space<vmem>>, %arg4: memref<2x1024xf32, #tpu.memory_space<vmem>>) attributes {dimension_semantics = [#tpu.dimension_semantics<parallel>, #tpu.dimension_semantics<parallel>], iteration_bounds = array<i64: 1, 1>, scalar_prefetch = 0 : i64, scratch_operands = 0 : i64, tpu.core_type = #tpu.core_type<tc>, window_params = [{transform_indices = @transform_0, window_bounds = array<i64: 2, 1024>}, {transform_indices = @transform_1, window_bounds = array<i64: 1, 1024>}, {transform_indices = @transform_2, window_bounds = array<i64: 2, 1024>}]} {
    %c0 = arith.constant 0 : index
    %c0_0 = arith.constant 0 : index
    %0 = vector.load %arg2[%c0, %c0_0] : memref<2x1024xf32, #tpu.memory_space<vmem>>, vector<2x1024xf32>
    %c0_1 = arith.constant 0 : index
    %c0_2 = arith.constant 0 : index
    %1 = vector.load %arg3[%c0_1, %c0_2] : memref<1x1024xf32, #tpu.memory_space<vmem>>, vector<1x1024xf32>
    %2 = vector.broadcast %1 : vector<1x1024xf32> to vector<2x1024xf32>
    %3 = arith.mulf %0, %2 : vector<2x1024xf32>
    %c0_3 = arith.constant 0 : index
    %c0_4 = arith.constant 0 : index
    %4 = vector.load %arg4[%c0_3, %c0_4] : memref<2x1024xf32, #tpu.memory_space<vmem>>, vector<2x1024xf32>
    tpu.vector_store %arg4[%c0_3, %c0_4], %3 {strides = array<i32>} : memref<2x1024xf32, #tpu.memory_space<vmem>>, vector<2x1024xf32>,
    return
  }
  func.func @transform_0(%arg0: i32, %arg1: i32) -> (i32, i32) {
    %c0_i32 = arith.constant 0 : i32
    return %arg0, %arg1 : i32, i32
  }
  func.func @transform_1(%arg0: i32, %arg1: i32) -> (i32, i32) {
    %c0_i32 = arith.constant 0 : i32
    %c0_i32_0 = arith.constant 0 : i32
    return %c0_i32, %arg1 : i32, i32
  }
  func.func @transform_2(%arg0: i32, %arg1: i32) -> (i32, i32) {
    %c0_i32 = arith.constant 0 : i32
    return %arg0, %arg1 : i32, i32
  }
}

</mosaic_0001>

<llo_original>
// kernel: tpu_custom_call.1
$region0: #{tpu_custom_call.1}
  #allocation0 [shape = 'u32[]', space=smem, size = 0x4, offset = 0x4, fixed_abs, tag = 'smem constant byte address 0x4 - core index']
  #allocation1 [shape = 'u32[144,128]{1,0:T(1,128)}', space=vmem, size = 0x12000, scoped, tag = 'internal scratch']
  %s0 = inlined_call_operand.hbm [shape: f32[2,1024], index: 0, kind: input, shape index: {}]
  %s1 = inlined_call_operand.hbm [shape: f32[1,1024], index: 1, kind: input, shape index: {}]
  %s2 = inlined_call_operand.hbm [shape: f32[2,1024], index: 2, kind: output, shape index: {}]
  %s3 = sld [smem:[#allocation0]]
  $region26: #{tpu_custom_call.1} parent=0
    _
  %s5 = ssub.s32 1, %s3
  %s6 = scalar_select 0, %s5, %s3
  $region1: #{tpu_custom_call.1} parent=0
    #allocation2 [shape = 'u8[8192]{0}', space=vmem, size = 0x2000, scoped, tag = 'input window, operand 0, single buffered']
    #allocation3 [shape = 's32[1]{0}', space=sflag, size = 0x4, scoped, tag = 'scoped memory for tpu_custom_call.1']
    #allocation4 [shape = 's32[1]{0}', space=sflag, size = 0x4, scoped, tag = 'scoped memory for tpu_custom_call.1']
    #allocation5 [shape = 'u8[4096]{0}', space=vmem, size = 0x1000, scoped, tag = 'input window, operand 1, single buffered']
    #allocation6 [shape = 's32[1]{0}', space=sflag, size = 0x4, scoped, tag = 'scoped memory for tpu_custom_call.1']
    #allocation7 [shape = 'u8[8192]{0}', space=vmem, size = 0x2000, scoped, tag = 'output window, operand 0, single buffered']
    %7 = vsyncpa [#allocation3], 0
    %8 = vsyncpa [#allocation6], 0
    %9 = vsyncpa [#allocation4], 0
    // Predicated region
    $region2: #{tpu_custom_call.1} parent=1 // pred_check
      _
    $region3: #{tpu_custom_call.1} parent=1 // pred_check_branch
      %11 = sbr.rel (0) target = $region5
    $region4: #{tpu_custom_call.1} parent=1 // pred_region
      %s13 = ssub.s32 256, 256
      %14 = vsyncadd [#allocation3], %s13
      %s16 = sshll.u32 [#allocation2], 4
      %s17 = int_to_ptr.vmem [resolvable:$true] %s16
      %19 = dma.hbm_to_vmem [thread:$0]  %s0, 256, %s17, [#allocation3]
    $region5: #{tpu_custom_call.1} parent=1 // pred_fallthru
      _
    // Predicated region
    $region6: #{tpu_custom_call.1} parent=1 // pred_check
      _
    $region7: #{tpu_custom_call.1} parent=1 // pred_check_branch
      %21 = sbr.rel (0) target = $region9
    $region8: #{tpu_custom_call.1} parent=1 // pred_region
      %s23 = ssub.s32 128, 128
      %24 = vsyncadd [#allocation6], %s23
      %s26 = sshll.u32 [#allocation5], 4
      %s27 = int_to_ptr.vmem [resolvable:$true] %s26
      %29 = dma.hbm_to_vmem [thread:$0]  %s1, 128, %s27, [#allocation6]
    $region9: #{tpu_custom_call.1} parent=1 // pred_fallthru
      _
    // Predicated region
    $region10: #{tpu_custom_call.1} parent=1 // pred_check
      _
    $region11: #{tpu_custom_call.1} parent=1 // pred_check_branch
      %31 = sbr.rel (0) target = $region13
    $region12: #{tpu_custom_call.1} parent=1 // pred_region
      %32 = dma.done [#allocation3], 256
    $region13: #{tpu_custom_call.1} parent=1 // pred_fallthru
      _
    // Predicated region
    $region14: #{tpu_custom_call.1} parent=1 // pred_check
      _
    $region15: #{tpu_custom_call.1} parent=1 // pred_check_branch
      %34 = sbr.rel (0) target = $region17
    $region16: #{tpu_custom_call.1} parent=1 // pred_region
      %35 = dma.done [#allocation6], 128
    $region17: #{tpu_custom_call.1} parent=1 // pred_fallthru
      _
    %v36 = vld [vmem:[#allocation2] sm:$0xff]
    %v37 = vld [vmem:[#allocation2 + $0x8] sm:$0xff]
    %v38 = vld [vmem:[#allocation5] sm:$0xff]
    %v40 = vlaneseq
    %v41 = vshrl.u32 %v40, 7
    %v42 = vsub.s32 0, %v41
    %v43 = vrot.slane %v38, %v42
    %v44 = vlaneseq
    %v45 = vshrl.u32 %v44, 7
    %v46 = vsub.s32 1, %v45
    %v47 = vrot.slane %v38, %v46
    %v48 = vlaneseq
    %v49 = vshrl.u32 %v48, 7
    %v50 = vsub.s32 2, %v49
    %v51 = vrot.slane %v38, %v50
    %v52 = vlaneseq
    %v53 = vshrl.u32 %v52, 7
    %v54 = vsub.s32 3, %v53
    %v55 = vrot.slane %v38, %v54
    %v56 = vlaneseq
    %v57 = vshrl.u32 %v56, 7
    %v58 = vsub.s32 4, %v57
    %v59 = vrot.slane %v38, %v58
    %v60 = vlaneseq
    %v61 = vshrl.u32 %v60, 7
    %v62 = vsub.s32 5, %v61
    %v63 = vrot.slane %v38, %v62
    %v64 = vlaneseq
    %v65 = vshrl.u32 %v64, 7
    %v66 = vsub.s32 6, %v65
    %v67 = vrot.slane %v38, %v66
    %v68 = vlaneseq
    %v69 = vshrl.u32 %v68, 7
    %v70 = vsub.s32 7, %v69
    %v71 = vrot.slane %v38, %v70
    %v72 = vcombine.low %v43, %v47
    %v73 = vcombine.low %v51, %v55
    %v75 = vunpack.c.l.s4 1983009808
    %v76 = vunpack.c.0.s8 %v75
    %v77 = vlaneseq
    %v78 = vshrl.u32 %v77, 7
    %v79 = vsub.s32 %v76, %v78
    %v80 = vrot.slane %v72, %v79
    %v82 = vunpack.c.l.s4 1983009808
    %v83 = vunpack.c.0.s8 %v82
    %v84 = vlaneseq
    %v85 = vshrl.u32 %v84, 7
    %v86 = vsub.s32 %v83, %v85
    %v87 = vrot.slane %v73, %v86
    %v88 = vcombine.low %v80, %v87
    %v89 = vcombine.low %v59, %v63
    %v90 = vcombine.low %v67, %v71
    %v92 = vunpack.c.l.s4 1983009808
    %v93 = vunpack.c.0.s8 %v92
    %v94 = vlaneseq
    %v95 = vshrl.u32 %v94, 7
    %v96 = vsub.s32 %v93, %v95
    %v97 = vrot.slane %v89, %v96
    %v99 = vunpack.c.l.s4 1983009808
    %v100 = vunpack.c.0.s8 %v99
    %v101 = vlaneseq
    %v102 = vshrl.u32 %v101, 7
    %v103 = vsub.s32 %v100, %v102
    %v104 = vrot.slane %v90, %v103
    %v105 = vcombine.low %v97, %v104
    %v108 = vmul.f32 %v36, %v88
    %v109 = vmul.f32 %v37, %v105
    %110 = vst [vmem:[#allocation7] sm:$0xff] %v108
    %111 = vst [vmem:[#allocation7 + $0x8] sm:$0xff] %v109
    // Predicated region
    $region18: #{tpu_custom_call.1} parent=1 // pred_check
      _
    $region19: #{tpu_custom_call.1} parent=1 // pred_check_branch
      %113 = sbr.rel (0) target = $region21
    $region20: #{tpu_custom_call.1} parent=1 // pred_region
      %s115 = ssub.s32 256, 256
      %116 = vsyncadd [#allocation4], %s115
      %s118 = sshll.u32 [#allocation7], 4
      %s119 = int_to_ptr.vmem [resolvable:$true] %s118
      %121 = dma.vmem_to_hbm [thread:$0]  %s119, 256, %s2, [#allocation4]
    $region21: #{tpu_custom_call.1} parent=1 // pred_fallthru
      _
    // Predicated region
    $region22: #{tpu_custom_call.1} parent=1 // pred_check
      _
    $region23: #{tpu_custom_call.1} parent=1 // pred_check_branch
      %123 = sbr.rel (0) target = $region25
    $region24: #{tpu_custom_call.1} parent=1 // pred_region
      %124 = dma.done [#allocation4], 256
    $region25: #{tpu_custom_call.1} parent=1 // pred_fallthru
      _
    %125 = vsyncpa [#allocation3], 1
    %126 = vsyncpa [#allocation6], 1
    %127 = vsyncpa [#allocation4], 1

</llo_original>
